<compile_context>
chip_gen: v7x
topology: tpu7x:2x2x1
jax: 0.10.0
libtpu: 0.0.40
codegen_flags: <defaults>
</compile_context>

<pallas_src>
import functools

import jax
import jax.numpy as jnp
from jax.experimental import pallas as pl
from jax.experimental.pallas import tpu as pltpu

NEG_SLOPE = 0.2            # PyG GATConv default LeakyReLU negative slope
MASK_VAL = -1e30           # "minus infinity" for masked (non-edge) scores
LANE = 128                 # pad the node axis to a multiple of this
TILE_CANDIDATES = (1024, 512, 256, 128)


def _round_up(x, m):
    return ((x + m - 1) // m) * m


def _vmem_limits():
    """Generation-aware scoped-VMEM limit and tile-picking budget.

    v5e/v6e have 128 MiB VMEM -> ~104 MiB limit; v7x has 64 MiB per TensorCore
    -> ~40 MiB limit.  Falls back to conservative v7x numbers if the hardware
    query is unavailable.
    """
    cap = 64 * 1024 * 1024
    try:
        info = pltpu.get_tpu_info()
        cap = int(getattr(info, "vmem_capacity_bytes", cap) or cap)
    except Exception:
        pass
    limit = min(max(cap - 24 * 1024 * 1024, 32 * 1024 * 1024), 104 * 1024 * 1024)
    budget = max(limit - 8 * 1024 * 1024, 24 * 1024 * 1024)
    return limit, budget


def _pick_tile(n_pad, out_ch, budget):
    """Largest dst-row tile fitting the per-grid-step VMEM estimate.

    Heads live on an inner grid axis, so only one head's blocks are charged.
    """
    for t in TILE_CANDIDATES:
        if n_pad % t:
            continue
        per_step = (
            2 * n_pad * out_ch * 2      # xp head block (bf16, double-buffered)
            + 2 * n_pad * 4             # alpha_src row (f32)
            + 2 * t * n_pad             # int8 adj tile
            + 2 * t * n_pad * 2         # bf16 attn output tile
            + 4 * t * out_ch * 4        # out + logp blocks
            + 3 * t * n_pad * 4         # live f32 score/exp temporaries
        )
        if per_step <= budget:
            return t
    return 128


def _elu(o):
    return jnp.where(o > 0.0, o, jnp.exp(jnp.minimum(o, 0.0)) - 1.0)


# --------------------------------------------------------------------------
# Pallas kernels
# --------------------------------------------------------------------------
def gat_project_kernel(x_ref, wext_ref, xp_ref, asrc_ref, adst_ref,
                       *, heads, out_ch):
    """Single extended matmul: projection + per-head attention logits.

    x_ref    : (T, F_in)                node-feature row tile (f32)
    wext_ref : (F_in, H*C + 2H)         [W | W@asrc_h | W@adst_h]
    xp_ref   : (H, T, C)   bf16         projected features, head-major layout
    asrc_ref : (T, H)      f32          alpha_src[node, head]
    adst_ref : (H, T, 1)   f32          alpha_dst[head, node]
    """
    hc = heads * out_ch
    xe = jnp.dot(x_ref[...], wext_ref[...], preferred_element_type=jnp.float32)
    asrc_ref[...] = xe[:, hc:hc + heads]
    for h in range(heads):
        xp_ref[h, :, :] = xe[:, h * out_ch:(h + 1) * out_ch].astype(jnp.bfloat16)
        c0 = hc + heads + h
        adst_ref[h, :, :] = xe[:, c0:c0 + 1]


def gat_attn_kernel(xp_ref, asrc_ref, adst_ref, bias_ref, adj_ref, *out_refs,
                    heads, out_ch, concat, apply_elu, with_log_softmax):
    """Attention softmax + aggregation for one (dst-row tile, head) grid step.

    xp_ref   : (1, N_pad, C) bf16   head h's projected features (all sources)
    asrc_ref : (1, 1, N_pad) f32    head h's alpha_src (source nodes lane-dense)
    adst_ref : (1, TILE, 1)  f32    head h's alpha_dst for this dst-row tile
    bias_ref : (1, 1, C)     f32
    adj_ref  : (TILE, N_pad) int8   edge mask for this tile (0 in padded region)
    out_refs : out, attn (1, TILE, N_pad) bf16 [, logp (TILE, C)]
    """
    if with_log_softmax:
        out_ref, attn_ref, logp_ref = out_refs
    else:
        out_ref, attn_ref = out_refs
        logp_ref = None

    h = pl.program_id(1)

    xh = xp_ref[0]                      # (N_pad, C) bf16
    a_s = asrc_ref[0]                   # (1, N_pad)
    a_d = adst_ref[0]                   # (TILE, 1)

    # scores[i, j] = LeakyReLU(alpha_dst[i] + alpha_src[j]), masked to -inf
    s = a_d + a_s                                    # (TILE, N_pad)
    s = jnp.maximum(s, NEG_SLOPE * s)                # LeakyReLU (2 VPU passes)
    s = jnp.where(adj_ref[...] != 0, s, MASK_VAL)

    # softmax over source nodes j; masked entries underflow to exactly 0;
    # self-loops guarantee every real row has denom >= 1 (no 1/0 risk).
    m = jnp.max(s, axis=-1, keepdims=True)
    e = jnp.exp(s - m)
    denom = jnp.sum(e, axis=-1, keepdims=True)
    attn = (e * pl.reciprocal(denom, approx=True)).astype(jnp.bfloat16)
    attn_ref[0, :, :] = attn

    # aggregation: bf16 MXU operands, f32 accumulation
    ho = jnp.dot(attn, xh, preferred_element_type=jnp.float32)   # (TILE, C)

    if concat:
        o = ho + bias_ref[0]
        if apply_elu:
            o = _elu(o)
        out_ref[0, :, :] = o
    else:
        # out block index is invariant along h -> resident f32 accumulator.
        @pl.when(h == 0)
        def _():
            out_ref[...] = ho

        @pl.when(h > 0)
        def _():
            out_ref[...] += ho

        @pl.when(h == heads - 1)
        def _():
            o = out_ref[...] * (1.0 / float(heads)) + bias_ref[0]
            if apply_elu:
                o = _elu(o)
            out_ref[...] = o
            if with_log_softmax:
                mm = jnp.max(o, axis=-1, keepdims=True)
                z = o - mm
                lse = jnp.log(jnp.sum(jnp.exp(z), axis=-1, keepdims=True))
                logp_ref[...] = z - lse


# --------------------------------------------------------------------------
# Wrappers around pallas_call
# --------------------------------------------------------------------------
def gat_project(x_pad, w_ext, *, heads, out_ch, tile, vmem_limit):
    n_pad, f_in = x_pad.shape
    wcols = w_ext.shape[1]
    kernel = functools.partial(gat_project_kernel, heads=heads, out_ch=out_ch)
    return pl.pallas_call(
        kernel,
        grid=(n_pad // tile,),
        out_shape=(jax.ShapeDtypeStruct((heads, n_pad, out_ch), jnp.bfloat16),
                   jax.ShapeDtypeStruct((n_pad, heads), jnp.float32),
                   jax.ShapeDtypeStruct((heads, n_pad, 1), jnp.float32)),
        in_specs=[pl.BlockSpec((tile, f_in), lambda i: (i, 0)),
                  pl.BlockSpec((f_in, wcols), lambda i: (0, 0))],
        out_specs=(pl.BlockSpec((heads, tile, out_ch), lambda i: (0, i, 0)),
                   pl.BlockSpec((tile, heads), lambda i: (i, 0)),
                   pl.BlockSpec((heads, tile, 1), lambda i: (0, i, 0))),
        compiler_params=pltpu.CompilerParams(
            dimension_semantics=("parallel",),
            vmem_limit_bytes=vmem_limit),
    )(x_pad, w_ext)


def gat_attention(xp, a_src_t, a_dst3, bias3, adj_i8, *, heads, out_ch, concat,
                  apply_elu, with_log_softmax, tile, vmem_limit):
    n_pad = xp.shape[1]
    kernel = functools.partial(gat_attn_kernel, heads=heads, out_ch=out_ch,
                               concat=concat, apply_elu=apply_elu,
                               with_log_softmax=with_log_softmax)

    in_specs = [
        pl.BlockSpec((1, n_pad, out_ch), lambda i, h: (h, 0, 0)),   # xp (per head)
        pl.BlockSpec((1, 1, n_pad), lambda i, h: (h, 0, 0)),        # alpha_src row
        pl.BlockSpec((1, tile, 1), lambda i, h: (h, i, 0)),         # alpha_dst col
        pl.BlockSpec((1, 1, out_ch),
                     (lambda i, h: (h, 0, 0)) if concat
                     else (lambda i, h: (0, 0, 0))),                # bias
        pl.BlockSpec((tile, n_pad), lambda i, h: (i, 0)),           # int8 adj tile
    ]

    if concat:
        out_shapes = [jax.ShapeDtypeStruct((heads, n_pad, out_ch), jnp.float32),
                      jax.ShapeDtypeStruct((heads, n_pad, n_pad), jnp.bfloat16)]
        out_specs = [pl.BlockSpec((1, tile, out_ch), lambda i, h: (h, i, 0)),
                     pl.BlockSpec((1, tile, n_pad), lambda i, h: (h, i, 0))]
    else:
        out_shapes = [jax.ShapeDtypeStruct((n_pad, out_ch), jnp.float32),
                      jax.ShapeDtypeStruct((heads, n_pad, n_pad), jnp.bfloat16)]
        out_specs = [pl.BlockSpec((tile, out_ch), lambda i, h: (i, 0)),
                     pl.BlockSpec((1, tile, n_pad), lambda i, h: (h, i, 0))]
    if with_log_softmax:
        out_shapes.append(jax.ShapeDtypeStruct((n_pad, out_ch), jnp.float32))
        out_specs.append(pl.BlockSpec((tile, out_ch), lambda i, h: (i, 0)))

    return pl.pallas_call(
        kernel,
        grid=(n_pad // tile, heads),
        out_shape=tuple(out_shapes),
        in_specs=in_specs,
        out_specs=tuple(out_specs),
        compiler_params=pltpu.CompilerParams(
            dimension_semantics=("parallel", "arbitrary"),
            vmem_limit_bytes=vmem_limit),
    )(xp, a_src_t, a_dst3, bias3, adj_i8)


def gat_layer(x_pad, adj_i8, p, *, concat, apply_elu, with_log_softmax=False):
    heads, out_ch = p["heads"], p["out_ch"]
    n_pad = x_pad.shape[0]
    vmem_limit, budget = _vmem_limits()
    tile = _pick_tile(n_pad, out_ch, budget)

    xp, a_src, a_dst3 = gat_project(x_pad, p["w_ext"], heads=heads,
                                    out_ch=out_ch, tile=tile,
                                    vmem_limit=vmem_limit)
    # tiny (N_pad, H) transpose outside the kernel -> lane-dense alpha_src rows
    a_src_t = jnp.transpose(a_src).reshape(heads, 1, n_pad)
    bias3 = p["bias"].reshape(heads if concat else 1, 1, out_ch)

    outs = gat_attention(xp, a_src_t, a_dst3, bias3, adj_i8, heads=heads,
                         out_ch=out_ch, concat=concat, apply_elu=apply_elu,
                         with_log_softmax=with_log_softmax, tile=tile,
                         vmem_limit=vmem_limit)
    if with_log_softmax:
        out_raw, attn, logp = outs
    else:
        out_raw, attn = outs
        logp = None

    if concat:
        # head-major (H, N, C) -> concatenated (N, H*C); tiny XLA transpose
        out = jnp.transpose(out_raw, (1, 0, 2)).reshape(n_pad, heads * out_ch)
    else:
        out = out_raw
    return (out, attn, logp) if with_log_softmax else (out, attn)


def gat_at_forward(x, adj, params, layer):
    """GAT_AT.forward (eval mode) for layer_type='standard'."""
    n = x.shape[0]
    n_pad = _round_up(max(n, LANE), LANE)
    x_pad = jnp.zeros((n_pad, x.shape[1]), jnp.float32).at[:n].set(x)
    adj_i8 = jnp.zeros((n_pad, n_pad), jnp.int8).at[:n, :n].set(adj.astype(jnp.int8))

    if layer == 1:
        p = params["conv3"]
        h, attn, logp = gat_layer(x_pad, adj_i8, p, concat=False, apply_elu=True,
                                  with_log_softmax=True)
        return logp[:n], attn[:, :n, :n], h[:n]
    elif layer == 2:
        p1, p2 = params["conv1"], params["conv2"]
        h1, att1 = gat_layer(x_pad, adj_i8, p1, concat=True, apply_elu=True)
        h2, att2, logp = gat_layer(h1, adj_i8, p2, concat=False, apply_elu=False,
                                   with_log_softmax=True)
        return logp[:n], [att1[:, :n, :n], att2[:, :n, :n]], h2[:n]
    else:
        raise ValueError("layer must be 1 or 2")


# --------------------------------------------------------------------------
# Parameter preparation (fold alpha vectors into an extended weight matrix)
# --------------------------------------------------------------------------
def add_wext(p):
    w, asrc, adst = p["w"], p["asrc"], p["adst"]
    heads, c = p["heads"], p["out_ch"]
    cols = [w]
    cols += [w[:, h * c:(h + 1) * c] @ asrc[h][:, None] for h in range(heads)]
    cols += [w[:, h * c:(h + 1) * c] @ adst[h][:, None] for h in range(heads)]
    q = dict(p)
    q["w_ext"] = jnp.concatenate(cols, axis=1)
    return q


# --------------------------------------------------------------------------
# Pure-JAX reference (same math in f32, used only as a correctness check)
# --------------------------------------------------------------------------
def gat_layer_ref(x, w, asrc, adst, bias, adj, heads, out_ch, concat, apply_elu):
    xp = x @ w
    outs, attns = [], []
    for h in range(heads):
        xh = xp[:, h * out_ch:(h + 1) * out_ch]
        a_d = xh @ adst[h][:, None]
        a_s = (xh @ asrc[h][:, None]).T
        s = a_d + a_s
        s = jnp.where(s >= 0, s, NEG_SLOPE * s)
        s = jnp.where(adj > 0, s, MASK_VAL)
        m = jnp.max(s, -1, keepdims=True)
        e = jnp.where(adj > 0, jnp.exp(s - m), 0.0)
        attn = e / jnp.sum(e, -1, keepdims=True)
        attns.append(attn)
        outs.append(attn @ xh)
    if concat:
        out = jnp.concatenate(outs, -1) + bias
    else:
        out = sum(outs) / heads + bias
    if apply_elu:
        out = jnp.where(out > 0, out, jnp.exp(jnp.minimum(out, 0.0)) - 1.0)
    return out, jnp.stack(attns)


def log_softmax_ref(x):
    z = x - jnp.max(x, -1, keepdims=True)
    return z - jnp.log(jnp.sum(jnp.exp(z), -1, keepdims=True))


# --------------------------------------------------------------------------
# Deterministic setup
# --------------------------------------------------------------------------
def glorot(key, shape):
    fan_in, fan_out = shape[-2], shape[-1]
    lim = (6.0 / (fan_in + fan_out)) ** 0.5
    return jax.random.uniform(key, shape, jnp.float32, -lim, lim)


def build_adjacency(key, n):
    src = jnp.arange(n)
    dst = (src + 1) % n
    srcs = jnp.concatenate([src, dst])
    dsts = jnp.concatenate([dst, src])
    k = 2 * n
    rs = jax.random.randint(key, (k,), 0, n)
    rd = jax.random.randint(jax.random.fold_in(key, 1), (k,), 0, n)
    srcs = jnp.concatenate([srcs, rs])
    dsts = jnp.concatenate([dsts, rd])
    adj = jnp.zeros((n, n), jnp.float32).at[dsts, srcs].set(1.0)
    adj = jnp.maximum(adj, jnp.eye(n, dtype=jnp.float32))   # add self-loops
    return adj


if __name__ == "__main__":
    N, F_IN, HID, HEADS, NUM_CLASSES = 32, 16, 8, 4, 4

    key = jax.random.PRNGKey(0)
    keys = jax.random.split(key, 12)

    x = jax.random.normal(keys[0], (N, F_IN), jnp.float32)
    adj = build_adjacency(keys[1], N)

    params = {
        # GATConv(F_IN, HID, heads=HEADS, concat=True)
        "conv1": dict(w=glorot(keys[2], (F_IN, HEADS * HID)),
                      asrc=glorot(keys[3], (HEADS, HID)),
                      adst=glorot(keys[4], (HEADS, HID)),
                      bias=jnp.zeros((1, HEADS * HID), jnp.float32),
                      heads=HEADS, out_ch=HID),
        # GATConv(HEADS*HID, NUM_CLASSES, heads=1, concat=False)
        "conv2": dict(w=glorot(keys[5], (HEADS * HID, NUM_CLASSES)),
                      asrc=glorot(keys[6], (1, NUM_CLASSES)),
                      adst=glorot(keys[7], (1, NUM_CLASSES)),
                      bias=jnp.zeros((1, NUM_CLASSES), jnp.float32),
                      heads=1, out_ch=NUM_CLASSES),
        # GATConv(F_IN, NUM_CLASSES, heads=HEADS, concat=False)
        "conv3": dict(w=glorot(keys[8], (F_IN, HEADS * NUM_CLASSES)),
                      asrc=glorot(keys[9], (HEADS, NUM_CLASSES)),
                      adst=glorot(keys[10], (HEADS, NUM_CLASSES)),
                      bias=jnp.zeros((1, NUM_CLASSES), jnp.float32),
                      heads=HEADS, out_ch=NUM_CLASSES),
    }
    params = {k: add_wext(v) for k, v in params.items()}

    # Kernel uses bf16 xp / bf16 attention storage / bf16 MXU aggregation and
    # the EUP approx reciprocal; f32 reference comparison uses a 3e-2 tolerance.
    RTOL = ATOL = 3e-2

    # ---- layer=2 path (conv1 -> elu -> conv2 -> fused log_softmax) --------
    logp2, (att1, att2), h2 = gat_at_forward(x, adj, params, layer=2)
    jax.block_until_ready((logp2, att1, att2, h2))

    p1, p2 = params["conv1"], params["conv2"]
    r1, ratt1 = gat_layer_ref(x, p1["w"], p1["asrc"], p1["adst"], p1["bias"],
                              adj, p1["heads"], p1["out_ch"], True, True)
    r2, ratt2 = gat_layer_ref(r1, p2["w"], p2["asrc"], p2["adst"], p2["bias"],
                              adj, p2["heads"], p2["out_ch"], False, False)
    assert jnp.allclose(logp2, log_softmax_ref(r2), rtol=RTOL, atol=ATOL)
    assert jnp.allclose(h2, r2, rtol=RTOL, atol=ATOL)
    assert jnp.allclose(att1, ratt1, rtol=RTOL, atol=ATOL)
    assert jnp.allclose(att2, ratt2, rtol=RTOL, atol=ATOL)

    # ---- layer=1 path (conv3 -> elu -> fused log_softmax) -----------------
    logp1, att3, h1 = gat_at_forward(x, adj, params, layer=1)
    jax.block_until_ready((logp1, att3, h1))

    p3 = params["conv3"]
    r3, ratt3 = gat_layer_ref(x, p3["w"], p3["asrc"], p3["adst"], p3["bias"],
                              adj, p3["heads"], p3["out_ch"], False, True)
    assert jnp.allclose(logp1, log_softmax_ref(r3), rtol=RTOL, atol=ATOL)
    assert jnp.allclose(h1, r3, rtol=RTOL, atol=ATOL)
    assert jnp.allclose(att3, ratt3, rtol=RTOL, atol=ATOL)

    print("KERNEL_OK")
</pallas_src>

<mosaic_0001>
module attributes {stable_mosaic.version = 11 : i64} {
  func.func @gat_project_kernel(%arg0: i32, %arg1: memref<128x16xf32, #tpu.memory_space<vmem>>, %arg2: memref<16x40xf32, #tpu.memory_space<vmem>>, %arg3: memref<4x128x8xbf16, #tpu.memory_space<vmem>>, %arg4: memref<128x4xf32, #tpu.memory_space<vmem>>, %arg5: memref<4x128x1xf32, #tpu.memory_space<vmem>>) attributes {dimension_semantics = [#tpu.dimension_semantics<parallel>], iteration_bounds = array<i64: 1>, scalar_prefetch = 0 : i64, scratch_operands = 0 : i64, tpu.core_type = #tpu.core_type<tc>, window_params = [{transform_indices = @transform_0, window_bounds = array<i64: 128, 16>}, {pipeline_mode = #tpu.pipeline_mode<synchronous>, transform_indices = @transform_1, window_bounds = array<i64: 16, 40>}, {transform_indices = @transform_2, window_bounds = array<i64: 4, 128, 8>}, {transform_indices = @transform_3, window_bounds = array<i64: 128, 4>}, {transform_indices = @transform_4, window_bounds = array<i64: 4, 128, 1>}]} {
    %c0 = arith.constant 0 : index
    %c0_0 = arith.constant 0 : index
    %0 = vector.load %arg1[%c0, %c0_0] : memref<128x16xf32, #tpu.memory_space<vmem>>, vector<128x16xf32>
    %c0_1 = arith.constant 0 : index
    %c0_2 = arith.constant 0 : index
    %1 = vector.load %arg2[%c0_1, %c0_2] : memref<16x40xf32, #tpu.memory_space<vmem>>, vector<16x40xf32>
    %cst = arith.constant dense<0.000000e+00> : vector<128x40xf32>
    %2 = tpu.matmul %0, %1, %cst {dimension_numbers = #tpu.dot_dimension_numbers<[1], [0], [0], [1], [0, 0, 1, 1], [], []>} : vector<128x16xf32>, vector<16x40xf32>, vector<128x40xf32> -> vector<128x40xf32>
    %3 = vector.extract_strided_slice %2 {offsets = [0, 32], sizes = [128, 4], strides = [1, 1]} : vector<128x40xf32> to vector<128x4xf32>
    %c0_3 = arith.constant 0 : index
    %c0_4 = arith.constant 0 : index
    %4 = vector.load %arg4[%c0_3, %c0_4] : memref<128x4xf32, #tpu.memory_space<vmem>>, vector<128x4xf32>
    tpu.vector_store %arg4[%c0_3, %c0_4], %3 {strides = array<i32>} : memref<128x4xf32, #tpu.memory_space<vmem>>, vector<128x4xf32>,
    %5 = vector.extract_strided_slice %2 {offsets = [0, 0], sizes = [128, 8], strides = [1, 1]} : vector<128x40xf32> to vector<128x8xf32>
    %6 = arith.truncf %5 : vector<128x8xf32> to vector<128x8xbf16>
    %c0_5 = arith.constant 0 : index
    %c0_6 = arith.constant 0 : index
    %c0_7 = arith.constant 0 : index
    %7 = vector.load %arg3[%c0_5, %c0_6, %c0_7] : memref<4x128x8xbf16, #tpu.memory_space<vmem>>, vector<1x128x8xbf16>
    %8 = vector.shape_cast %7 : vector<1x128x8xbf16> to vector<128x8xbf16>
    %9 = vector.shape_cast %6 : vector<128x8xbf16> to vector<1x128x8xbf16>
    tpu.vector_store %arg3[%c0_5, %c0_6, %c0_7], %9 {strides = array<i32>} : memref<4x128x8xbf16, #tpu.memory_space<vmem>>, vector<1x128x8xbf16>,
    %10 = vector.extract_strided_slice %2 {offsets = [0, 36], sizes = [128, 1], strides = [1, 1]} : vector<128x40xf32> to vector<128x1xf32>
    %c0_8 = arith.constant 0 : index
    %c0_9 = arith.constant 0 : index
    %c0_10 = arith.constant 0 : index
    %11 = vector.load %arg5[%c0_8, %c0_9, %c0_10] : memref<4x128x1xf32, #tpu.memory_space<vmem>>, vector<1x128x1xf32>
    %12 = vector.shape_cast %11 : vector<1x128x1xf32> to vector<128x1xf32>
    %13 = vector.shape_cast %10 : vector<128x1xf32> to vector<1x128x1xf32>
    tpu.vector_store %arg5[%c0_8, %c0_9, %c0_10], %13 {strides = array<i32>} : memref<4x128x1xf32, #tpu.memory_space<vmem>>, vector<1x128x1xf32>,
    %14 = vector.extract_strided_slice %2 {offsets = [0, 8], sizes = [128, 8], strides = [1, 1]} : vector<128x40xf32> to vector<128x8xf32>
    %15 = arith.truncf %14 : vector<128x8xf32> to vector<128x8xbf16>
    %c1 = arith.constant 1 : index
    %c0_11 = arith.constant 0 : index
    %c0_12 = arith.constant 0 : index
    %16 = vector.load %arg3[%c1, %c0_11, %c0_12] : memref<4x128x8xbf16, #tpu.memory_space<vmem>>, vector<1x128x8xbf16>
    %17 = vector.shape_cast %16 : vector<1x128x8xbf16> to vector<128x8xbf16>
    %18 = vector.shape_cast %15 : vector<128x8xbf16> to vector<1x128x8xbf16>
    tpu.vector_store %arg3[%c1, %c0_11, %c0_12], %18 {strides = array<i32>} : memref<4x128x8xbf16, #tpu.memory_space<vmem>>, vector<1x128x8xbf16>,
    %19 = vector.extract_strided_slice %2 {offsets = [0, 37], sizes = [128, 1], strides = [1, 1]} : vector<128x40xf32> to vector<128x1xf32>
    %c1_13 = arith.constant 1 : index
    %c0_14 = arith.constant 0 : index
    %c0_15 = arith.constant 0 : index
    %20 = vector.load %arg5[%c1_13, %c0_14, %c0_15] : memref<4x128x1xf32, #tpu.memory_space<vmem>>, vector<1x128x1xf32>
    %21 = vector.shape_cast %20 : vector<1x128x1xf32> to vector<128x1xf32>
    %22 = vector.shape_cast %19 : vector<128x1xf32> to vector<1x128x1xf32>
    tpu.vector_store %arg5[%c1_13, %c0_14, %c0_15], %22 {strides = array<i32>} : memref<4x128x1xf32, #tpu.memory_space<vmem>>, vector<1x128x1xf32>,
    %23 = vector.extract_strided_slice %2 {offsets = [0, 16], sizes = [128, 8], strides = [1, 1]} : vector<128x40xf32> to vector<128x8xf32>
    %24 = arith.truncf %23 : vector<128x8xf32> to vector<128x8xbf16>
    %c2 = arith.constant 2 : index
    %c0_16 = arith.constant 0 : index
    %c0_17 = arith.constant 0 : index
    %25 = vector.load %arg3[%c2, %c0_16, %c0_17] : memref<4x128x8xbf16, #tpu.memory_space<vmem>>, vector<1x128x8xbf16>
    %26 = vector.shape_cast %25 : vector<1x128x8xbf16> to vector<128x8xbf16>
    %27 = vector.shape_cast %24 : vector<128x8xbf16> to vector<1x128x8xbf16>
    tpu.vector_store %arg3[%c2, %c0_16, %c0_17], %27 {strides = array<i32>} : memref<4x128x8xbf16, #tpu.memory_space<vmem>>, vector<1x128x8xbf16>,
    %28 = vector.extract_strided_slice %2 {offsets = [0, 38], sizes = [128, 1], strides = [1, 1]} : vector<128x40xf32> to vector<128x1xf32>
    %c2_18 = arith.constant 2 : index
    %c0_19 = arith.constant 0 : index
    %c0_20 = arith.constant 0 : index
    %29 = vector.load %arg5[%c2_18, %c0_19, %c0_20] : memref<4x128x1xf32, #tpu.memory_space<vmem>>, vector<1x128x1xf32>
    %30 = vector.shape_cast %29 : vector<1x128x1xf32> to vector<128x1xf32>
    %31 = vector.shape_cast %28 : vector<128x1xf32> to vector<1x128x1xf32>
    tpu.vector_store %arg5[%c2_18, %c0_19, %c0_20], %31 {strides = array<i32>} : memref<4x128x1xf32, #tpu.memory_space<vmem>>, vector<1x128x1xf32>,
    %32 = vector.extract_strided_slice %2 {offsets = [0, 24], sizes = [128, 8], strides = [1, 1]} : vector<128x40xf32> to vector<128x8xf32>
    %33 = arith.truncf %32 : vector<128x8xf32> to vector<128x8xbf16>
    %c3 = arith.constant 3 : index
    %c0_21 = arith.constant 0 : index
    %c0_22 = arith.constant 0 : index
    %34 = vector.load %arg3[%c3, %c0_21, %c0_22] : memref<4x128x8xbf16, #tpu.memory_space<vmem>>, vector<1x128x8xbf16>
    %35 = vector.shape_cast %34 : vector<1x128x8xbf16> to vector<128x8xbf16>
    %36 = vector.shape_cast %33 : vector<128x8xbf16> to vector<1x128x8xbf16>
    tpu.vector_store %arg3[%c3, %c0_21, %c0_22], %36 {strides = array<i32>} : memref<4x128x8xbf16, #tpu.memory_space<vmem>>, vector<1x128x8xbf16>,
    %37 = vector.extract_strided_slice %2 {offsets = [0, 39], sizes = [128, 1], strides = [1, 1]} : vector<128x40xf32> to vector<128x1xf32>
    %c3_23 = arith.constant 3 : index
    %c0_24 = arith.constant 0 : index
    %c0_25 = arith.constant 0 : index
    %38 = vector.load %arg5[%c3_23, %c0_24, %c0_25] : memref<4x128x1xf32, #tpu.memory_space<vmem>>, vector<1x128x1xf32>
    %39 = vector.shape_cast %38 : vector<1x128x1xf32> to vector<128x1xf32>
    %40 = vector.shape_cast %37 : vector<128x1xf32> to vector<1x128x1xf32>
    tpu.vector_store %arg5[%c3_23, %c0_24, %c0_25], %40 {strides = array<i32>} : memref<4x128x1xf32, #tpu.memory_space<vmem>>, vector<1x128x1xf32>,
    return
  }
  func.func @transform_0(%arg0: i32) -> (i32, i32) {
    %c0_i32 = arith.constant 0 : i32
    %c0_i32_0 = arith.constant 0 : i32
    return %arg0, %c0_i32 : i32, i32
  }
  func.func @transform_1(%arg0: i32) -> (i32, i32) {
    %c0_i32 = arith.constant 0 : i32
    %c0_i32_0 = arith.constant 0 : i32
    %c0_i32_1 = arith.constant 0 : i32
    return %c0_i32, %c0_i32_0 : i32, i32
  }
  func.func @transform_2(%arg0: i32) -> (i32, i32, i32) {
    %c0_i32 = arith.constant 0 : i32
    %c0_i32_0 = arith.constant 0 : i32
    %c0_i32_1 = arith.constant 0 : i32
    return %c0_i32, %arg0, %c0_i32_0 : i32, i32, i32
  }
  func.func @transform_3(%arg0: i32) -> (i32, i32) {
    %c0_i32 = arith.constant 0 : i32
    %c0_i32_0 = arith.constant 0 : i32
    return %arg0, %c0_i32 : i32, i32
  }
  func.func @transform_4(%arg0: i32) -> (i32, i32, i32) {
    %c0_i32 = arith.constant 0 : i32
    %c0_i32_0 = arith.constant 0 : i32
    %c0_i32_1 = arith.constant 0 : i32
    return %c0_i32, %arg0, %c0_i32_0 : i32, i32, i32
  }
}

</mosaic_0001>

<llo_original>
// kernel: tpu_custom_call.1
$region0: #{tpu_custom_call.1}
  #allocation0 [shape = 'u32[]', space=smem, size = 0x4, offset = 0x4, fixed_abs, tag = 'smem constant byte address 0x4 - core index']
  #allocation1 [shape = 'u32[144,128]{1,0:T(1,128)}', space=vmem, size = 0x12000, scoped, tag = 'internal scratch']
  %s0 = inlined_call_operand.vmem [shape: f32[128,16], index: 0, kind: input, shape index: {}]
  %s1 = inlined_call_operand.vmem [shape: f32[16,40], index: 1, kind: input, shape index: {}]
  %s2 = inlined_call_operand.vmem [shape: bf16[4,128,8], index: 2, kind: output, shape index: {0}]
  %s3 = inlined_call_operand.vmem [shape: f32[128,4], index: 3, kind: output, shape index: {1}]
  %s4 = inlined_call_operand.vmem [shape: f32[4,128,1], index: 4, kind: output, shape index: {2}]
  %5 = xla_tuple %s2, %s3, %s4
  %s6 = sld [smem:[#allocation0]]
  $region34: #{tpu_custom_call.1} parent=0
    _
  %s8 = ssub.s32 1, %s6
  %s9 = scalar_select 0, %s8, %s6
  // Predicated region
  $region2: #{tpu_custom_call.1} parent=0 // pred_check
    _
  $region3: #{tpu_custom_call.1} parent=0 // pred_check_branch
    %11 = sbr.rel (0) target = $region5
  $region4: #{tpu_custom_call.1} parent=0 // pred_region
    _
  $region5: #{tpu_custom_call.1} parent=0 // pred_fallthru
    _
  // Predicated region
  $region6: #{tpu_custom_call.1} parent=0 // pred_check
    _
  $region7: #{tpu_custom_call.1} parent=0 // pred_check_branch
    %13 = sbr.rel (0) target = $region9
  $region8: #{tpu_custom_call.1} parent=0 // pred_region
    _
  $region9: #{tpu_custom_call.1} parent=0 // pred_fallthru
    _
  %v14 = vld [vmem:[%s0] sm:$0xff]
  %v15 = vld [vmem:[%s0 + $0x8] sm:$0xff]
  %v16 = vld [vmem:[%s0 + $0x10] sm:$0xff]
  %v17 = vld [vmem:[%s0 + $0x18] sm:$0xff]
  %v18 = vld [vmem:[%s0 + $0x20] sm:$0xff]
  %v19 = vld [vmem:[%s0 + $0x28] sm:$0xff]
  %v20 = vld [vmem:[%s0 + $0x30] sm:$0xff]
  %v21 = vld [vmem:[%s0 + $0x38] sm:$0xff]
  %v22 = vld [vmem:[%s0 + $0x40] sm:$0xff]
  %v23 = vld [vmem:[%s0 + $0x48] sm:$0xff]
  %v24 = vld [vmem:[%s0 + $0x50] sm:$0xff]
  %v25 = vld [vmem:[%s0 + $0x58] sm:$0xff]
  %v26 = vld [vmem:[%s0 + $0x60] sm:$0xff]
  %v27 = vld [vmem:[%s0 + $0x68] sm:$0xff]
  %v28 = vld [vmem:[%s0 + $0x70] sm:$0xff]
  %v29 = vld [vmem:[%s0 + $0x78] sm:$0xff]
  %v30 = vld [vmem:[%s1] sm:$0xff]
  %v31 = vld [vmem:[%s1 + $0x8] sm:$0xff]
  %vm32 = vcmask 130048
  %v34 = vsel %vm32, %v14, 0
  %v37 = vsel %vm32, %v15, 0
  %v40 = vsel %vm32, %v16, 0
  %v43 = vsel %vm32, %v17, 0
  %v46 = vsel %vm32, %v18, 0
  %v49 = vsel %vm32, %v19, 0
  %v52 = vsel %vm32, %v20, 0
  %v55 = vsel %vm32, %v21, 0
  %v58 = vsel %vm32, %v22, 0
  %v61 = vsel %vm32, %v23, 0
  %v64 = vsel %vm32, %v24, 0
  %v67 = vsel %vm32, %v25, 0
  %v70 = vsel %vm32, %v26, 0
  %v73 = vsel %vm32, %v27, 0
  %v76 = vsel %vm32, %v28, 0
  %v79 = vsel %vm32, %v29, 0
  %81 = vmatprep.subr.mxu0 0.0
  %82 = vmatpush1.msra.mxu0 %v30
  %83 = vmatprep.subr.mxu0 0.0
  %84 = vmatpush1.msra.mxu0 %v31
  %85 = vmatprep.subr.mxu0 0.0
  %86 = vmatpush1.msra.mxu0 0.0
  %87 = vmatprep.subr.mxu0 0.0
  %88 = vmatpush1.msra.mxu0 0.0
  %89 = vmatprep.subr.mxu0 0.0
  %90 = vmatpush1.msra.mxu0 0.0
  %91 = vmatprep.subr.mxu0 0.0
  %92 = vmatpush1.msra.mxu0 0.0
  %93 = vmatprep.subr.mxu0 0.0
  %94 = vmatpush1.msra.mxu0 0.0
  %95 = vmatprep.subr.mxu0 0.0
  %96 = vmatpush1.msra.mxu0 0.0
  %97 = vmatprep.subr.mxu0 0.0
  %98 = vmatpush1.msra.mxu0 0.0
  %99 = vmatprep.subr.mxu0 0.0
  %100 = vmatpush1.msra.mxu0 0.0
  %101 = vmatprep.subr.mxu0 0.0
  %102 = vmatpush1.msra.mxu0 0.0
  %103 = vmatprep.subr.mxu0 0.0
  %104 = vmatpush1.msra.mxu0 0.0
  %105 = vmatprep.subr.mxu0 0.0
  %106 = vmatpush1.msra.mxu0 0.0
  %107 = vmatprep.subr.mxu0 0.0
  %108 = vmatpush1.msra.mxu0 0.0
  %109 = vmatprep.subr.mxu0 0.0
  %110 = vmatpush1.msra.mxu0 0.0
  %111 = vmatprep.subr.mxu0 0.0
  %112 = vmatpush1.msra.mxu0 0.0
  %113 = vmatprep.subr.mxu0 0.0
  %114 = vmatpush1.msra.mxu0 0.0
  %115 = vmatprep.subr.mxu0 0.0
  %116 = vmatpush1.msra.mxu0 0.0
  %117 = vmatprep.subr.mxu0 0.0
  %118 = vmatpush1.msra.mxu0 0.0
  %119 = vmatprep.subr.mxu0 0.0
  %120 = vmatpush1.msra.mxu0 0.0
  %121 = vmatprep.subr.mxu0 0.0
  %122 = vmatpush1.msra.mxu0 0.0
  %123 = vmatprep.subr.mxu0 0.0
  %124 = vmatpush1.msra.mxu0 0.0
  %125 = vmatprep.subr.mxu0 0.0
  %126 = vmatpush1.msra.mxu0 0.0
  %127 = vmatprep.subr.mxu0 0.0
  %128 = vmatpush1.msra.mxu0 0.0
  %129 = vmatprep.subr.mxu0 0.0
  %130 = vmatpush1.msra.mxu0 0.0
  %131 = vmatprep.subr.mxu0 0.0
  %132 = vmatpush1.msra.mxu0 0.0
  %133 = vmatprep.subr.mxu0 0.0
  %134 = vmatpush1.msra.mxu0 0.0
  %135 = vmatprep.subr.mxu0 0.0
  %136 = vmatpush1.msra.mxu0 0.0
  %137 = vmatprep.subr.mxu0 0.0
  %138 = vmatpush1.msra.mxu0 0.0
  %139 = vmatprep.subr.mxu0 0.0
  %140 = vmatpush1.msra.mxu0 0.0
  %141 = vmatprep.subr.mxu0 0.0
  %142 = vmatpush1.msra.mxu0 0.0
  %143 = vmatprep.subr.mxu0 0.0
  %144 = vmatpush1.msra.mxu0 0.0
  %145 = vmatprep.mubr.f32.mxu0 0.0
  %146 = vmatmul.mubr.f32.gmra.mrb[0].mxu0 %v34
  %v147 = vpop.f32.mrb[0].mxu0
  %v148 = vadd.f32 0.0, %v147
  %v149 = vpop.f32.mrb[0].mxu0
  %150 = vmatprep.mubr.f32.mxu0 0.0
  %151 = vmatmul.mubr.f32.gmra.mrb[0].mxu0 %v37
  %v152 = vpop.f32.mrb[0].mxu0
  %v153 = vadd.f32 0.0, %v152
  %v154 = vpop.f32.mrb[0].mxu0
  %155 = vmatprep.mubr.f32.mxu0 0.0
  %156 = vmatmul.mubr.f32.gmra.mrb[0].mxu0 %v40
  %v157 = vpop.f32.mrb[0].mxu0
  %v158 = vadd.f32 0.0, %v157
  %v159 = vpop.f32.mrb[0].mxu0
  %160 = vmatprep.mubr.f32.mxu0 0.0
  %161 = vmatmul.mubr.f32.gmra.mrb[0].mxu0 %v43
  %v162 = vpop.f32.mrb[0].mxu0
  %v163 = vadd.f32 0.0, %v162
  %v164 = vpop.f32.mrb[0].mxu0
  %165 = vmatprep.mubr.f32.mxu0 0.0
  %166 = vmatmul.mubr.f32.gmra.mrb[0].mxu0 %v46
  %v167 = vpop.f32.mrb[0].mxu0
  %v168 = vadd.f32 0.0, %v167
  %v169 = vpop.f32.mrb[0].mxu0
  %170 = vmatprep.mubr.f32.mxu0 0.0
  %171 = vmatmul.mubr.f32.gmra.mrb[0].mxu0 %v49
  %v172 = vpop.f32.mrb[0].mxu0
  %v173 = vadd.f32 0.0, %v172
  %v174 = vpop.f32.mrb[0].mxu0
  %175 = vmatprep.mubr.f32.mxu0 0.0
  %176 = vmatmul.mubr.f32.gmra.mrb[0].mxu0 %v52
  %v177 = vpop.f32.mrb[0].mxu0
  %v178 = vadd.f32 0.0, %v177
  %v179 = vpop.f32.mrb[0].mxu0
  %180 = vmatprep.mubr.f32.mxu0 0.0
  %181 = vmatmul.mubr.f32.gmra.mrb[0].mxu0 %v55
  %v182 = vpop.f32.mrb[0].mxu0
  %v183 = vadd.f32 0.0, %v182
  %v184 = vpop.f32.mrb[0].mxu0
  %185 = vmatprep.mubr.f32.mxu0 0.0
  %186 = vmatmul.mubr.f32.gmra.mrb[0].mxu0 %v58
  %v187 = vpop.f32.mrb[0].mxu0
  %v188 = vadd.f32 0.0, %v187
  %v189 = vpop.f32.mrb[0].mxu0
  %190 = vmatprep.mubr.f32.mxu0 0.0
  %191 = vmatmul.mubr.f32.gmra.mrb[0].mxu0 %v61
  %v192 = vpop.f32.mrb[0].mxu0
  %v193 = vadd.f32 0.0, %v192
  %v194 = vpop.f32.mrb[0].mxu0
  %195 = vmatprep.mubr.f32.mxu0 0.0
  %196 = vmatmul.mubr.f32.gmra.mrb[0].mxu0 %v64
  %v197 = vpop.f32.mrb[0].mxu0
  %v198 = vadd.f32 0.0, %v197
  %v199 = vpop.f32.mrb[0].mxu0
  %200 = vmatprep.mubr.f32.mxu0 0.0
  %201 = vmatmul.mubr.f32.gmra.mrb[0].mxu0 %v67
  %v202 = vpop.f32.mrb[0].mxu0
  %v203 = vadd.f32 0.0, %v202
  %v204 = vpop.f32.mrb[0].mxu0
  %205 = vmatprep.mubr.f32.mxu0 0.0
  %206 = vmatmul.mubr.f32.gmra.mrb[0].mxu0 %v70
  %v207 = vpop.f32.mrb[0].mxu0
  %v208 = vadd.f32 0.0, %v207
  %v209 = vpop.f32.mrb[0].mxu0
  %210 = vmatprep.mubr.f32.mxu0 0.0
  %211 = vmatmul.mubr.f32.gmra.mrb[0].mxu0 %v73
  %v212 = vpop.f32.mrb[0].mxu0
  %v213 = vadd.f32 0.0, %v212
  %v214 = vpop.f32.mrb[0].mxu0
  %215 = vmatprep.mubr.f32.mxu0 0.0
  %216 = vmatmul.mubr.f32.gmra.mrb[0].mxu0 %v76
  %v217 = vpop.f32.mrb[0].mxu0
  %v218 = vadd.f32 0.0, %v217
  %v219 = vpop.f32.mrb[0].mxu0
  %220 = vmatprep.mubr.f32.mxu0 0.0
  %221 = vmatmul.mubr.f32.gmra.mrb[0].mxu0 %v79
  %v222 = vpop.f32.mrb[0].mxu0
  %v223 = vadd.f32 0.0, %v222
  %v224 = vpop.f32.mrb[0].mxu0
  %225 = vdwg.mxu0
  %242 = vrot.lane.b32.xlu0 %v148, 96
  %v243 = vpop.permute.xlu0 %242
  %244 = vrot.lane.b32.xlu0 %v153, 96
  %v245 = vpop.permute.xlu0 %244
  %246 = vrot.lane.b32.xlu0 %v158, 96
  %v247 = vpop.permute.xlu0 %246
  %248 = vrot.lane.b32.xlu0 %v163, 96
  %v249 = vpop.permute.xlu0 %248
  %250 = vrot.lane.b32.xlu0 %v168, 96
  %v251 = vpop.permute.xlu0 %250
  %252 = vrot.lane.b32.xlu0 %v173, 96
  %v253 = vpop.permute.xlu0 %252
  %254 = vrot.lane.b32.xlu0 %v178, 96
  %v255 = vpop.permute.xlu0 %254
  %256 = vrot.lane.b32.xlu0 %v183, 96
  %v257 = vpop.permute.xlu0 %256
  %258 = vrot.lane.b32.xlu0 %v188, 96
  %v259 = vpop.permute.xlu0 %258
  %260 = vrot.lane.b32.xlu0 %v193, 96
  %v261 = vpop.permute.xlu0 %260
  %262 = vrot.lane.b32.xlu0 %v198, 96
  %v263 = vpop.permute.xlu0 %262
  %264 = vrot.lane.b32.xlu0 %v203, 96
  %v265 = vpop.permute.xlu0 %264
  %266 = vrot.lane.b32.xlu0 %v208, 96
  %v267 = vpop.permute.xlu0 %266
  %268 = vrot.lane.b32.xlu0 %v213, 96
  %v269 = vpop.permute.xlu0 %268
  %270 = vrot.lane.b32.xlu0 %v218, 96
  %v271 = vpop.permute.xlu0 %270
  %272 = vrot.lane.b32.xlu0 %v223, 96
  %v273 = vpop.permute.xlu0 %272
  %vm290 = vcmask 31744
  %291 = vst.msk [vmem:[%s3] sm:$0xff] %vm290, %v243
  %292 = vst.msk [vmem:[%s3 + $0x8] sm:$0xff] %vm290, %v245
  %293 = vst.msk [vmem:[%s3 + $0x10] sm:$0xff] %vm290, %v247
  %294 = vst.msk [vmem:[%s3 + $0x18] sm:$0xff] %vm290, %v249
  %295 = vst.msk [vmem:[%s3 + $0x20] sm:$0xff] %vm290, %v251
  %296 = vst.msk [vmem:[%s3 + $0x28] sm:$0xff] %vm290, %v253
  %297 = vst.msk [vmem:[%s3 + $0x30] sm:$0xff] %vm290, %v255
  %298 = vst.msk [vmem:[%s3 + $0x38] sm:$0xff] %vm290, %v257
  %299 = vst.msk [vmem:[%s3 + $0x40] sm:$0xff] %vm290, %v259
  %300 = vst.msk [vmem:[%s3 + $0x48] sm:$0xff] %vm290, %v261
  %301 = vst.msk [vmem:[%s3 + $0x50] sm:$0xff] %vm290, %v263
  %302 = vst.msk [vmem:[%s3 + $0x58] sm:$0xff] %vm290, %v265
  %303 = vst.msk [vmem:[%s3 + $0x60] sm:$0xff] %vm290, %v267
  %304 = vst.msk [vmem:[%s3 + $0x68] sm:$0xff] %vm290, %v269
  %305 = vst.msk [vmem:[%s3 + $0x70] sm:$0xff] %vm290, %v271
  %306 = vst.msk [vmem:[%s3 + $0x78] sm:$0xff] %vm290, %v273
  %v307 = vpack.c.bf16 %v153, %v148
  %v308 = vpack.c.bf16 %v163, %v158
  %v309 = vpack.c.bf16 %v173, %v168
  %v310 = vpack.c.bf16 %v183, %v178
  %v311 = vpack.c.bf16 %v193, %v188
  %v312 = vpack.c.bf16 %v203, %v198
  %v313 = vpack.c.bf16 %v213, %v208
  %v314 = vpack.c.bf16 %v223, %v218
  %v323 = vunpack.c.l.b16 %v307
  %v324 = vunpack.c.h.b16 %v307
  %v325 = vunpack.c.l.b16 %v308
  %v326 = vunpack.c.h.b16 %v308
  %v327 = vunpack.c.l.b16 %v309
  %v328 = vunpack.c.h.b16 %v309
  %v329 = vunpack.c.l.b16 %v310
  %v330 = vunpack.c.h.b16 %v310
  %v331 = vunpack.c.l.b16 %v311
  %v332 = vunpack.c.h.b16 %v311
  %v333 = vunpack.c.l.b16 %v312
  %v334 = vunpack.c.h.b16 %v312
  %v335 = vunpack.c.l.b16 %v313
  %v336 = vunpack.c.h.b16 %v313
  %v337 = vunpack.c.l.b16 %v314
  %v338 = vunpack.c.h.b16 %v314
  %v339 = vpack.c.b16 %v323, %v323
  %v340 = vpack.c.b16 %v324, %v324
  %v341 = vpack.c.b16 %v325, %v325
  %v342 = vpack.c.b16 %v326, %v326
  %v343 = vpack.c.b16 %v327, %v327
  %v344 = vpack.c.b16 %v328, %v328
  %v345 = vpack.c.b16 %v329, %v329
  %v346 = vpack.c.b16 %v330, %v330
  %v347 = vpack.c.b16 %v331, %v331
  %v348 = vpack.c.b16 %v332, %v332
  %v349 = vpack.c.b16 %v333, %v333
  %v350 = vpack.c.b16 %v334, %v334
  %v351 = vpack.c.b16 %v335, %v335
  %v352 = vpack.c.b16 %v336, %v336
  %v353 = vpack.c.b16 %v337, %v337
  %v354 = vpack.c.b16 %v338, %v338
  %vm371 = vcmask 60416
  %372 = vst.msk [vmem:[%s2] sm:$0xf] %vm371, %v339
  %373 = vst.msk [vmem:[%s2 + $0x4] sm:$0xf] %vm371, %v340
  %374 = vst.msk [vmem:[%s2 + $0x8] sm:$0xf] %vm371, %v341
  %375 = vst.msk [vmem:[%s2 + $0xc] sm:$0xf] %vm371, %v342
  %376 = vst.msk [vmem:[%s2 + $0x10] sm:$0xf] %vm371, %v343
  %377 = vst.msk [vmem:[%s2 + $0x14] sm:$0xf] %vm371, %v344
  %378 = vst.msk [vmem:[%s2 + $0x18] sm:$0xf] %vm371, %v345
  %379 = vst.msk [vmem:[%s2 + $0x1c] sm:$0xf] %vm371, %v346
  %380 = vst.msk [vmem:[%s2 + $0x20] sm:$0xf] %vm371, %v347
  %381 = vst.msk [vmem:[%s2 + $0x24] sm:$0xf] %vm371, %v348
  %382 = vst.msk [vmem:[%s2 + $0x28] sm:$0xf] %vm371, %v349
  %383 = vst.msk [vmem:[%s2 + $0x2c] sm:$0xf] %vm371, %v350
  %384 = vst.msk [vmem:[%s2 + $0x30] sm:$0xf] %vm371, %v351
  %385 = vst.msk [vmem:[%s2 + $0x34] sm:$0xf] %vm371, %v352
  %386 = vst.msk [vmem:[%s2 + $0x38] sm:$0xf] %vm371, %v353
  %387 = vst.msk [vmem:[%s2 + $0x3c] sm:$0xf] %vm371, %v354
  %388 = vrot.lane.b32.xlu0 %v148, 92
  %v389 = vpop.permute.xlu0 %388
  %390 = vrot.lane.b32.xlu0 %v153, 92
  %v391 = vpop.permute.xlu0 %390
  %392 = vrot.lane.b32.xlu0 %v158, 92
  %v393 = vpop.permute.xlu0 %392
  %394 = vrot.lane.b32.xlu0 %v163, 92
  %v395 = vpop.permute.xlu0 %394
  %396 = vrot.lane.b32.xlu0 %v168, 92
  %v397 = vpop.permute.xlu0 %396
  %398 = vrot.lane.b32.xlu0 %v173, 92
  %v399 = vpop.permute.xlu0 %398
  %400 = vrot.lane.b32.xlu0 %v178, 92
  %v401 = vpop.permute.xlu0 %400
  %402 = vrot.lane.b32.xlu0 %v183, 92
  %v403 = vpop.permute.xlu0 %402
  %404 = vrot.lane.b32.xlu0 %v188, 92
  %v405 = vpop.permute.xlu0 %404
  %406 = vrot.lane.b32.xlu0 %v193, 92
  %v407 = vpop.permute.xlu0 %406
  %408 = vrot.lane.b32.xlu0 %v198, 92
  %v409 = vpop.permute.xlu0 %408
  %410 = vrot.lane.b32.xlu0 %v203, 92
  %v411 = vpop.permute.xlu0 %410
  %412 = vrot.lane.b32.xlu0 %v208, 92
  %v413 = vpop.permute.xlu0 %412
  %414 = vrot.lane.b32.xlu0 %v213, 92
  %v415 = vpop.permute.xlu0 %414
  %416 = vrot.lane.b32.xlu0 %v218, 92
  %v417 = vpop.permute.xlu0 %416
  %418 = vrot.lane.b32.xlu0 %v223, 92
  %v419 = vpop.permute.xlu0 %418
  %vm436 = vcmask 7168
  %437 = vst.msk [vmem:[%s4] sm:$0xff] %vm436, %v389
  %438 = vst.msk [vmem:[%s4 + $0x8] sm:$0xff] %vm436, %v391
  %439 = vst.msk [vmem:[%s4 + $0x10] sm:$0xff] %vm436, %v393
  %440 = vst.msk [vmem:[%s4 + $0x18] sm:$0xff] %vm436, %v395
  %441 = vst.msk [vmem:[%s4 + $0x20] sm:$0xff] %vm436, %v397
  %442 = vst.msk [vmem:[%s4 + $0x28] sm:$0xff] %vm436, %v399
  %443 = vst.msk [vmem:[%s4 + $0x30] sm:$0xff] %vm436, %v401
  %444 = vst.msk [vmem:[%s4 + $0x38] sm:$0xff] %vm436, %v403
  %445 = vst.msk [vmem:[%s4 + $0x40] sm:$0xff] %vm436, %v405
  %446 = vst.msk [vmem:[%s4 + $0x48] sm:$0xff] %vm436, %v407
  %447 = vst.msk [vmem:[%s4 + $0x50] sm:$0xff] %vm436, %v409
  %448 = vst.msk [vmem:[%s4 + $0x58] sm:$0xff] %vm436, %v411
  %449 = vst.msk [vmem:[%s4 + $0x60] sm:$0xff] %vm436, %v413
  %450 = vst.msk [vmem:[%s4 + $0x68] sm:$0xff] %vm436, %v415
  %451 = vst.msk [vmem:[%s4 + $0x70] sm:$0xff] %vm436, %v417
  %452 = vst.msk [vmem:[%s4 + $0x78] sm:$0xff] %vm436, %v419
  %453 = vrot.lane.b32.xlu0 %v339, 120
  %v454 = vpop.permute.xlu0 %453
  %455 = vrot.lane.b32.xlu0 %v340, 120
  %v456 = vpop.permute.xlu0 %455
  %457 = vrot.lane.b32.xlu0 %v341, 120
  %v458 = vpop.permute.xlu0 %457
  %459 = vrot.lane.b32.xlu0 %v342, 120
  %v460 = vpop.permute.xlu0 %459
  %461 = vrot.lane.b32.xlu0 %v343, 120
  %v462 = vpop.permute.xlu0 %461
  %463 = vrot.lane.b32.xlu0 %v344, 120
  %v464 = vpop.permute.xlu0 %463
  %465 = vrot.lane.b32.xlu0 %v345, 120
  %v466 = vpop.permute.xlu0 %465
  %467 = vrot.lane.b32.xlu0 %v346, 120
  %v468 = vpop.permute.xlu0 %467
  %469 = vrot.lane.b32.xlu0 %v347, 120
  %v470 = vpop.permute.xlu0 %469
  %471 = vrot.lane.b32.xlu0 %v348, 120
  %v472 = vpop.permute.xlu0 %471
  %473 = vrot.lane.b32.xlu0 %v349, 120
  %v474 = vpop.permute.xlu0 %473
  %475 = vrot.lane.b32.xlu0 %v350, 120
  %v476 = vpop.permute.xlu0 %475
  %477 = vrot.lane.b32.xlu0 %v351, 120
  %v478 = vpop.permute.xlu0 %477
  %479 = vrot.lane.b32.xlu0 %v352, 120
  %v480 = vpop.permute.xlu0 %479
  %481 = vrot.lane.b32.xlu0 %v353, 120
  %v482 = vpop.permute.xlu0 %481
  %483 = vrot.lane.b32.xlu0 %v354, 120
  %v484 = vpop.permute.xlu0 %483
  %s501 = scalar_lea.vmem %s2, 64
  %502 = vst.msk [vmem:[%s501] sm:$0xf] %vm371, %v454
  %503 = vst.msk [vmem:[%s501 + $0x4] sm:$0xf] %vm371, %v456
  %504 = vst.msk [vmem:[%s501 + $0x8] sm:$0xf] %vm371, %v458
  %505 = vst.msk [vmem:[%s501 + $0xc] sm:$0xf] %vm371, %v460
  %506 = vst.msk [vmem:[%s501 + $0x10] sm:$0xf] %vm371, %v462
  %507 = vst.msk [vmem:[%s501 + $0x14] sm:$0xf] %vm371, %v464
  %508 = vst.msk [vmem:[%s501 + $0x18] sm:$0xf] %vm371, %v466
  %509 = vst.msk [vmem:[%s501 + $0x1c] sm:$0xf] %vm371, %v468
  %510 = vst.msk [vmem:[%s501 + $0x20] sm:$0xf] %vm371, %v470
  %511 = vst.msk [vmem:[%s501 + $0x24] sm:$0xf] %vm371, %v472
  %512 = vst.msk [vmem:[%s501 + $0x28] sm:$0xf] %vm371, %v474
  %513 = vst.msk [vmem:[%s501 + $0x2c] sm:$0xf] %vm371, %v476
  %514 = vst.msk [vmem:[%s501 + $0x30] sm:$0xf] %vm371, %v478
  %515 = vst.msk [vmem:[%s501 + $0x34] sm:$0xf] %vm371, %v480
  %516 = vst.msk [vmem:[%s501 + $0x38] sm:$0xf] %vm371, %v482
  %517 = vst.msk [vmem:[%s501 + $0x3c] sm:$0xf] %vm371, %v484
  %518 = vrot.lane.b32.xlu0 %v148, 91
  %v519 = vpop.permute.xlu0 %518
  %520 = vrot.lane.b32.xlu0 %v153, 91
  %v521 = vpop.permute.xlu0 %520
  %522 = vrot.lane.b32.xlu0 %v158, 91
  %v523 = vpop.permute.xlu0 %522
  %524 = vrot.lane.b32.xlu0 %v163, 91
  %v525 = vpop.permute.xlu0 %524
  %526 = vrot.lane.b32.xlu0 %v168, 91
  %v527 = vpop.permute.xlu0 %526
  %528 = vrot.lane.b32.xlu0 %v173, 91
  %v529 = vpop.permute.xlu0 %528
  %530 = vrot.lane.b32.xlu0 %v178, 91
  %v531 = vpop.permute.xlu0 %530
  %532 = vrot.lane.b32.xlu0 %v183, 91
  %v533 = vpop.permute.xlu0 %532
  %534 = vrot.lane.b32.xlu0 %v188, 91
  %v535 = vpop.permute.xlu0 %534
  %536 = vrot.lane.b32.xlu0 %v193, 91
  %v537 = vpop.permute.xlu0 %536
  %538 = vrot.lane.b32.xlu0 %v198, 91
  %v539 = vpop.permute.xlu0 %538
  %540 = vrot.lane.b32.xlu0 %v203, 91
  %v541 = vpop.permute.xlu0 %540
  %542 = vrot.lane.b32.xlu0 %v208, 91
  %v543 = vpop.permute.xlu0 %542
  %544 = vrot.lane.b32.xlu0 %v213, 91
  %v545 = vpop.permute.xlu0 %544
  %546 = vrot.lane.b32.xlu0 %v218, 91
  %v547 = vpop.permute.xlu0 %546
  %548 = vrot.lane.b32.xlu0 %v223, 91
  %v549 = vpop.permute.xlu0 %548
  %s566 = scalar_lea.vmem %s4, 128
  %567 = vst.msk [vmem:[%s566] sm:$0xff] %vm436, %v519
  %568 = vst.msk [vmem:[%s566 + $0x8] sm:$0xff] %vm436, %v521
  %569 = vst.msk [vmem:[%s566 + $0x10] sm:$0xff] %vm436, %v523
  %570 = vst.msk [vmem:[%s566 + $0x18] sm:$0xff] %vm436, %v525
  %571 = vst.msk [vmem:[%s566 + $0x20] sm:$0xff] %vm436, %v527
  %572 = vst.msk [vmem:[%s566 + $0x28] sm:$0xff] %vm436, %v529
  %573 = vst.msk [vmem:[%s566 + $0x30] sm:$0xff] %vm436, %v531
  %574 = vst.msk [vmem:[%s566 + $0x38] sm:$0xff] %vm436, %v533
  %575 = vst.msk [vmem:[%s566 + $0x40] sm:$0xff] %vm436, %v535
  %576 = vst.msk [vmem:[%s566 + $0x48] sm:$0xff] %vm436, %v537
  %577 = vst.msk [vmem:[%s566 + $0x50] sm:$0xff] %vm436, %v539
  %578 = vst.msk [vmem:[%s566 + $0x58] sm:$0xff] %vm436, %v541
  %579 = vst.msk [vmem:[%s566 + $0x60] sm:$0xff] %vm436, %v543
  %580 = vst.msk [vmem:[%s566 + $0x68] sm:$0xff] %vm436, %v545
  %581 = vst.msk [vmem:[%s566 + $0x70] sm:$0xff] %vm436, %v547
  %582 = vst.msk [vmem:[%s566 + $0x78] sm:$0xff] %vm436, %v549
  %583 = vrot.lane.b32.xlu0 %v339, 112
  %v584 = vpop.permute.xlu0 %583
  %585 = vrot.lane.b32.xlu0 %v340, 112
  %v586 = vpop.permute.xlu0 %585
  %587 = vrot.lane.b32.xlu0 %v341, 112
  %v588 = vpop.permute.xlu0 %587
  %589 = vrot.lane.b32.xlu0 %v342, 112
  %v590 = vpop.permute.xlu0 %589
  %591 = vrot.lane.b32.xlu0 %v343, 112
  %v592 = vpop.permute.xlu0 %591
  %593 = vrot.lane.b32.xlu0 %v344, 112
  %v594 = vpop.permute.xlu0 %593
  %595 = vrot.lane.b32.xlu0 %v345, 112
  %v596 = vpop.permute.xlu0 %595
  %597 = vrot.lane.b32.xlu0 %v346, 112
  %v598 = vpop.permute.xlu0 %597
  %599 = vrot.lane.b32.xlu0 %v347, 112
  %v600 = vpop.permute.xlu0 %599
  %601 = vrot.lane.b32.xlu0 %v348, 112
  %v602 = vpop.permute.xlu0 %601
  %603 = vrot.lane.b32.xlu0 %v349, 112
  %v604 = vpop.permute.xlu0 %603
  %605 = vrot.lane.b32.xlu0 %v350, 112
  %v606 = vpop.permute.xlu0 %605
  %607 = vrot.lane.b32.xlu0 %v351, 112
  %v608 = vpop.permute.xlu0 %607
  %609 = vrot.lane.b32.xlu0 %v352, 112
  %v610 = vpop.permute.xlu0 %609
  %611 = vrot.lane.b32.xlu0 %v353, 112
  %v612 = vpop.permute.xlu0 %611
  %613 = vrot.lane.b32.xlu0 %v354, 112
  %v614 = vpop.permute.xlu0 %613
  %s631 = scalar_lea.vmem %s2, 128
  %632 = vst.msk [vmem:[%s631] sm:$0xf] %vm371, %v584
  %633 = vst.msk [vmem:[%s631 + $0x4] sm:$0xf] %vm371, %v586
  %634 = vst.msk [vmem:[%s631 + $0x8] sm:$0xf] %vm371, %v588
  %635 = vst.msk [vmem:[%s631 + $0xc] sm:$0xf] %vm371, %v590
  %636 = vst.msk [vmem:[%s631 + $0x10] sm:$0xf] %vm371, %v592
  %637 = vst.msk [vmem:[%s631 + $0x14] sm:$0xf] %vm371, %v594
  %638 = vst.msk [vmem:[%s631 + $0x18] sm:$0xf] %vm371, %v596
  %639 = vst.msk [vmem:[%s631 + $0x1c] sm:$0xf] %vm371, %v598
  %640 = vst.msk [vmem:[%s631 + $0x20] sm:$0xf] %vm371, %v600
  %641 = vst.msk [vmem:[%s631 + $0x24] sm:$0xf] %vm371, %v602
  %642 = vst.msk [vmem:[%s631 + $0x28] sm:$0xf] %vm371, %v604
  %643 = vst.msk [vmem:[%s631 + $0x2c] sm:$0xf] %vm371, %v606
  %644 = vst.msk [vmem:[%s631 + $0x30] sm:$0xf] %vm371, %v608
  %645 = vst.msk [vmem:[%s631 + $0x34] sm:$0xf] %vm371, %v610
  %646 = vst.msk [vmem:[%s631 + $0x38] sm:$0xf] %vm371, %v612
  %647 = vst.msk [vmem:[%s631 + $0x3c] sm:$0xf] %vm371, %v614
  %648 = vrot.lane.b32.xlu0 %v148, 90
  %v649 = vpop.permute.xlu0 %648
  %650 = vrot.lane.b32.xlu0 %v153, 90
  %v651 = vpop.permute.xlu0 %650
  %652 = vrot.lane.b32.xlu0 %v158, 90
  %v653 = vpop.permute.xlu0 %652
  %654 = vrot.lane.b32.xlu0 %v163, 90
  %v655 = vpop.permute.xlu0 %654
  %656 = vrot.lane.b32.xlu0 %v168, 90
  %v657 = vpop.permute.xlu0 %656
  %658 = vrot.lane.b32.xlu0 %v173, 90
  %v659 = vpop.permute.xlu0 %658
  %660 = vrot.lane.b32.xlu0 %v178, 90
  %v661 = vpop.permute.xlu0 %660
  %662 = vrot.lane.b32.xlu0 %v183, 90
  %v663 = vpop.permute.xlu0 %662
  %664 = vrot.lane.b32.xlu0 %v188, 90
  %v665 = vpop.permute.xlu0 %664
  %666 = vrot.lane.b32.xlu0 %v193, 90
  %v667 = vpop.permute.xlu0 %666
  %668 = vrot.lane.b32.xlu0 %v198, 90
  %v669 = vpop.permute.xlu0 %668
  %670 = vrot.lane.b32.xlu0 %v203, 90
  %v671 = vpop.permute.xlu0 %670
  %672 = vrot.lane.b32.xlu0 %v208, 90
  %v673 = vpop.permute.xlu0 %672
  %674 = vrot.lane.b32.xlu0 %v213, 90
  %v675 = vpop.permute.xlu0 %674
  %676 = vrot.lane.b32.xlu0 %v218, 90
  %v677 = vpop.permute.xlu0 %676
  %678 = vrot.lane.b32.xlu0 %v223, 90
  %v679 = vpop.permute.xlu0 %678
  %s696 = scalar_lea.vmem %s4, 256
  %697 = vst.msk [vmem:[%s696] sm:$0xff] %vm436, %v649
  %698 = vst.msk [vmem:[%s696 + $0x8] sm:$0xff] %vm436, %v651
  %699 = vst.msk [vmem:[%s696 + $0x10] sm:$0xff] %vm436, %v653
  %700 = vst.msk [vmem:[%s696 + $0x18] sm:$0xff] %vm436, %v655
  %701 = vst.msk [vmem:[%s696 + $0x20] sm:$0xff] %vm436, %v657
  %702 = vst.msk [vmem:[%s696 + $0x28] sm:$0xff] %vm436, %v659
  %703 = vst.msk [vmem:[%s696 + $0x30] sm:$0xff] %vm436, %v661
  %704 = vst.msk [vmem:[%s696 + $0x38] sm:$0xff] %vm436, %v663
  %705 = vst.msk [vmem:[%s696 + $0x40] sm:$0xff] %vm436, %v665
  %706 = vst.msk [vmem:[%s696 + $0x48] sm:$0xff] %vm436, %v667
  %707 = vst.msk [vmem:[%s696 + $0x50] sm:$0xff] %vm436, %v669
  %708 = vst.msk [vmem:[%s696 + $0x58] sm:$0xff] %vm436, %v671
  %709 = vst.msk [vmem:[%s696 + $0x60] sm:$0xff] %vm436, %v673
  %710 = vst.msk [vmem:[%s696 + $0x68] sm:$0xff] %vm436, %v675
  %711 = vst.msk [vmem:[%s696 + $0x70] sm:$0xff] %vm436, %v677
  %712 = vst.msk [vmem:[%s696 + $0x78] sm:$0xff] %vm436, %v679
  %713 = vrot.lane.b32.xlu0 %v339, 104
  %v714 = vpop.permute.xlu0 %713
  %715 = vrot.lane.b32.xlu0 %v340, 104
  %v716 = vpop.permute.xlu0 %715
  %717 = vrot.lane.b32.xlu0 %v341, 104
  %v718 = vpop.permute.xlu0 %717
  %719 = vrot.lane.b32.xlu0 %v342, 104
  %v720 = vpop.permute.xlu0 %719
  %721 = vrot.lane.b32.xlu0 %v343, 104
  %v722 = vpop.permute.xlu0 %721
  %723 = vrot.lane.b32.xlu0 %v344, 104
  %v724 = vpop.permute.xlu0 %723
  %725 = vrot.lane.b32.xlu0 %v345, 104
  %v726 = vpop.permute.xlu0 %725
  %727 = vrot.lane.b32.xlu0 %v346, 104
  %v728 = vpop.permute.xlu0 %727
  %729 = vrot.lane.b32.xlu0 %v347, 104
  %v730 = vpop.permute.xlu0 %729
  %731 = vrot.lane.b32.xlu0 %v348, 104
  %v732 = vpop.permute.xlu0 %731
  %733 = vrot.lane.b32.xlu0 %v349, 104
  %v734 = vpop.permute.xlu0 %733
  %735 = vrot.lane.b32.xlu0 %v350, 104
  %v736 = vpop.permute.xlu0 %735
  %737 = vrot.lane.b32.xlu0 %v351, 104
  %v738 = vpop.permute.xlu0 %737
  %739 = vrot.lane.b32.xlu0 %v352, 104
  %v740 = vpop.permute.xlu0 %739
  %741 = vrot.lane.b32.xlu0 %v353, 104
  %v742 = vpop.permute.xlu0 %741
  %743 = vrot.lane.b32.xlu0 %v354, 104
  %v744 = vpop.permute.xlu0 %743
  %s761 = scalar_lea.vmem %s2, 192
  %762 = vst.msk [vmem:[%s761] sm:$0xf] %vm371, %v714
  %763 = vst.msk [vmem:[%s761 + $0x4] sm:$0xf] %vm371, %v716
  %764 = vst.msk [vmem:[%s761 + $0x8] sm:$0xf] %vm371, %v718
  %765 = vst.msk [vmem:[%s761 + $0xc] sm:$0xf] %vm371, %v720
  %766 = vst.msk [vmem:[%s761 + $0x10] sm:$0xf] %vm371, %v722
  %767 = vst.msk [vmem:[%s761 + $0x14] sm:$0xf] %vm371, %v724
  %768 = vst.msk [vmem:[%s761 + $0x18] sm:$0xf] %vm371, %v726
  %769 = vst.msk [vmem:[%s761 + $0x1c] sm:$0xf] %vm371, %v728
  %770 = vst.msk [vmem:[%s761 + $0x20] sm:$0xf] %vm371, %v730
  %771 = vst.msk [vmem:[%s761 + $0x24] sm:$0xf] %vm371, %v732
  %772 = vst.msk [vmem:[%s761 + $0x28] sm:$0xf] %vm371, %v734
  %773 = vst.msk [vmem:[%s761 + $0x2c] sm:$0xf] %vm371, %v736
  %774 = vst.msk [vmem:[%s761 + $0x30] sm:$0xf] %vm371, %v738
  %775 = vst.msk [vmem:[%s761 + $0x34] sm:$0xf] %vm371, %v740
  %776 = vst.msk [vmem:[%s761 + $0x38] sm:$0xf] %vm371, %v742
  %777 = vst.msk [vmem:[%s761 + $0x3c] sm:$0xf] %vm371, %v744
  %778 = vrot.lane.b32.xlu0 %v148, 89
  %v779 = vpop.permute.xlu0 %778
  %780 = vrot.lane.b32.xlu0 %v153, 89
  %v781 = vpop.permute.xlu0 %780
  %782 = vrot.lane.b32.xlu0 %v158, 89
  %v783 = vpop.permute.xlu0 %782
  %784 = vrot.lane.b32.xlu0 %v163, 89
  %v785 = vpop.permute.xlu0 %784
  %786 = vrot.lane.b32.xlu0 %v168, 89
  %v787 = vpop.permute.xlu0 %786
  %788 = vrot.lane.b32.xlu0 %v173, 89
  %v789 = vpop.permute.xlu0 %788
  %790 = vrot.lane.b32.xlu0 %v178, 89
  %v791 = vpop.permute.xlu0 %790
  %792 = vrot.lane.b32.xlu0 %v183, 89
  %v793 = vpop.permute.xlu0 %792
  %794 = vrot.lane.b32.xlu0 %v188, 89
  %v795 = vpop.permute.xlu0 %794
  %796 = vrot.lane.b32.xlu0 %v193, 89
  %v797 = vpop.permute.xlu0 %796
  %798 = vrot.lane.b32.xlu0 %v198, 89
  %v799 = vpop.permute.xlu0 %798
  %800 = vrot.lane.b32.xlu0 %v203, 89
  %v801 = vpop.permute.xlu0 %800
  %802 = vrot.lane.b32.xlu0 %v208, 89
  %v803 = vpop.permute.xlu0 %802
  %804 = vrot.lane.b32.xlu0 %v213, 89
  %v805 = vpop.permute.xlu0 %804
  %806 = vrot.lane.b32.xlu0 %v218, 89
  %v807 = vpop.permute.xlu0 %806
  %808 = vrot.lane.b32.xlu0 %v223, 89
  %v809 = vpop.permute.xlu0 %808
  %s826 = scalar_lea.vmem %s4, 384
  %827 = vst.msk [vmem:[%s826] sm:$0xff] %vm436, %v779
  %828 = vst.msk [vmem:[%s826 + $0x8] sm:$0xff] %vm436, %v781
  %829 = vst.msk [vmem:[%s826 + $0x10] sm:$0xff] %vm436, %v783
  %830 = vst.msk [vmem:[%s826 + $0x18] sm:$0xff] %vm436, %v785
  %831 = vst.msk [vmem:[%s826 + $0x20] sm:$0xff] %vm436, %v787
  %832 = vst.msk [vmem:[%s826 + $0x28] sm:$0xff] %vm436, %v789
  %833 = vst.msk [vmem:[%s826 + $0x30] sm:$0xff] %vm436, %v791
  %834 = vst.msk [vmem:[%s826 + $0x38] sm:$0xff] %vm436, %v793
  %835 = vst.msk [vmem:[%s826 + $0x40] sm:$0xff] %vm436, %v795
  %836 = vst.msk [vmem:[%s826 + $0x48] sm:$0xff] %vm436, %v797
  %837 = vst.msk [vmem:[%s826 + $0x50] sm:$0xff] %vm436, %v799
  %838 = vst.msk [vmem:[%s826 + $0x58] sm:$0xff] %vm436, %v801
  %839 = vst.msk [vmem:[%s826 + $0x60] sm:$0xff] %vm436, %v803
  %840 = vst.msk [vmem:[%s826 + $0x68] sm:$0xff] %vm436, %v805
  %841 = vst.msk [vmem:[%s826 + $0x70] sm:$0xff] %vm436, %v807
  %842 = vst.msk [vmem:[%s826 + $0x78] sm:$0xff] %vm436, %v809
  // Predicated region
  $region10: #{tpu_custom_call.1} parent=0 // pred_check
    _
  $region11: #{tpu_custom_call.1} parent=0 // pred_check_branch
    %844 = sbr.rel (0) target = $region13
  $region12: #{tpu_custom_call.1} parent=0 // pred_region
    _
  $region13: #{tpu_custom_call.1} parent=0 // pred_fallthru
    _
  // Predicated region
  $region14: #{tpu_custom_call.1} parent=0 // pred_check
    _
  $region15: #{tpu_custom_call.1} parent=0 // pred_check_branch
    %846 = sbr.rel (0) target = $region17
  $region16: #{tpu_custom_call.1} parent=0 // pred_region
    _
  $region17: #{tpu_custom_call.1} parent=0 // pred_fallthru
    _
  // Predicated region
  $region18: #{tpu_custom_call.1} parent=0 // pred_check
    _
  $region19: #{tpu_custom_call.1} parent=0 // pred_check_branch
    %848 = sbr.rel (0) target = $region21
  $region20: #{tpu_custom_call.1} parent=0 // pred_region
    _
  $region21: #{tpu_custom_call.1} parent=0 // pred_fallthru
    _
  // Predicated region
  $region22: #{tpu_custom_call.1} parent=0 // pred_check
    _
  $region23: #{tpu_custom_call.1} parent=0 // pred_check_branch
    %850 = sbr.rel (0) target = $region25
  $region24: #{tpu_custom_call.1} parent=0 // pred_region
    _
  $region25: #{tpu_custom_call.1} parent=0 // pred_fallthru
    _
  // Predicated region
  $region26: #{tpu_custom_call.1} parent=0 // pred_check
    _
  $region27: #{tpu_custom_call.1} parent=0 // pred_check_branch
    %852 = sbr.rel (0) target = $region29
  $region28: #{tpu_custom_call.1} parent=0 // pred_region
    _
  $region29: #{tpu_custom_call.1} parent=0 // pred_fallthru
    _
  // Predicated region
  $region30: #{tpu_custom_call.1} parent=0 // pred_check
    _
  $region31: #{tpu_custom_call.1} parent=0 // pred_check_branch
    %854 = sbr.rel (0) target = $region33
  $region32: #{tpu_custom_call.1} parent=0 // pred_region
    _
  $region33: #{tpu_custom_call.1} parent=0 // pred_fallthru
    _

</llo_original>
